<compile_context>
chip_gen: v7x
topology: tpu7x:2x2x1
jax: 0.10.0
libtpu: 0.0.40
codegen_flags: <defaults>
</compile_context>

<pallas_src>
import functools

import jax
import jax.numpy as jnp
from jax.experimental import pallas as pl
from jax.experimental.pallas import tpu as pltpu

_LANE = 128
_SUBLANE = 8


def _global_avg_pool_kernel(x_ref, o_ref, *, inv_hw, hw):
    # x_ref: (BR, hw) tile in VMEM; o_ref: (BR, 1).
    x = x_ref[...].astype(jnp.float32)
    if hw % _LANE == 0 and _LANE < hw and (hw // _LANE) <= 64:
        # Strength-reduce the lane reduction: fold the 128-wide lane tiles
        # together with plain VPU adds (static, lane-tile-aligned slices ->
        # no relayout), then do a single cross-lane (XLU) reduce on the
        # remaining (BR, 128) slab.  Keeps the 2 XLUs on v7x off the critical
        # path for this purely HBM-bound kernel; harmless on v5e/v6e.
        acc = x[:, 0:_LANE]
        for j in range(1, hw // _LANE):
            acc = acc + x[:, j * _LANE:(j + 1) * _LANE]
        s = jnp.sum(acc, axis=-1, keepdims=True)
    else:
        s = jnp.sum(x, axis=-1, keepdims=True)
    # Divisor is the true H*W (static Python constant), NOT the block width,
    # so the kernel stays correct even if the hw axis is ever tiled later
    # (which would then also need an accumulator + pl.when finalize).
    o_ref[...] = (s * inv_hw).astype(o_ref.dtype)


def _choose_block_rows(rows, hw, itemsize):
    # Budget by the *lane-padded* width (each row occupies a multiple of 128
    # lanes in VMEM regardless of hw), double-buffered.  Keep the input tile
    # pair within ~16 MiB so it fits comfortably under v7x's 32 MiB scoped
    # default (64 MiB physical) and trivially on v5e/v6e (128 MiB).
    pad_hw = pl.cdiv(hw, _LANE) * _LANE
    budget = 16 * 1024 * 1024
    per_row = 2 * pad_hw * itemsize
    br = max(_SUBLANE, min(budget // per_row, 4096, rows))
    if br < rows:
        # Block second-to-last dim must be a multiple of 8 (or the full dim).
        br = max(_SUBLANE, (br // _SUBLANE) * _SUBLANE)
    return int(br)


def pool_layer_forward(x):
    """x: (N, C, H, W) -> (N, C)  (global average pool + flatten)."""
    N, C, H, W = x.shape
    rows = N * C
    hw = H * W
    x2d = x.reshape(rows, hw)

    br = _choose_block_rows(rows, hw, jnp.dtype(x.dtype).itemsize)
    grid = (pl.cdiv(rows, br),)

    kernel = functools.partial(_global_avg_pool_kernel, inv_hw=1.0 / hw, hw=hw)

    out = pl.pallas_call(
        kernel,
        out_shape=jax.ShapeDtypeStruct((rows, 1), x.dtype),
        grid_spec=pltpu.PrefetchScalarGridSpec(
            num_scalar_prefetch=0,
            grid=grid,
            in_specs=[pl.BlockSpec((br, hw), lambda i: (i, 0))],
            out_specs=pl.BlockSpec((br, 1), lambda i: (i, 0)),
        ),
        compiler_params=pltpu.CompilerParams(
            dimension_semantics=("parallel",),
            vmem_limit_bytes=48 * 1024 * 1024,
        ),
    )(x2d)

    return out.reshape(N, C)


if __name__ == "__main__":
    key = jax.random.PRNGKey(0)

    # Primary test: lane-aligned spatial dim (16*16 = 256).
    x = jax.random.normal(key, (2, 4, 16, 16), dtype=jnp.float32)
    y = pool_layer_forward(x)
    jax.block_until_ready(y)
    y_ref = jnp.mean(x, axis=(2, 3))
    assert y.shape == (2, 4)
    assert jnp.allclose(y, y_ref, atol=1e-5, rtol=1e-5)

    # Secondary test: non-128-multiple spatial dim (7*7 = 49) exercises the
    # lane-padded / generic-reduce path.
    x2 = jax.random.normal(jax.random.PRNGKey(1), (2, 3, 7, 7), dtype=jnp.float32)
    y2 = pool_layer_forward(x2)
    jax.block_until_ready(y2)
    y2_ref = jnp.mean(x2, axis=(2, 3))
    assert y2.shape == (2, 3)
    assert jnp.allclose(y2, y2_ref, atol=1e-5, rtol=1e-5)

    print("KERNEL_OK")
</pallas_src>

<mosaic_0001>
module attributes {stable_mosaic.version = 11 : i64} {
  func.func @_global_avg_pool_kernel(%arg0: i32, %arg1: memref<8x256xf32, #tpu.memory_space<vmem>>, %arg2: memref<8x1xf32, #tpu.memory_space<vmem>>) attributes {dimension_semantics = [#tpu.dimension_semantics<parallel>], iteration_bounds = array<i64: 1>, scalar_prefetch = 0 : i64, scratch_operands = 0 : i64, tpu.core_type = #tpu.core_type<tc>, window_params = [{transform_indices = @transform_0, window_bounds = array<i64: 8, 256>}, {transform_indices = @transform_1, window_bounds = array<i64: 8, 1>}]} {
    %c0 = arith.constant 0 : index
    %c0_0 = arith.constant 0 : index
    %0 = vector.load %arg1[%c0, %c0_0] : memref<8x256xf32, #tpu.memory_space<vmem>>, vector<8x256xf32>
    %1 = vector.extract_strided_slice %0 {offsets = [0, 0], sizes = [8, 128], strides = [1, 1]} : vector<8x256xf32> to vector<8x128xf32>
    %2 = vector.extract_strided_slice %0 {offsets = [0, 128], sizes = [8, 128], strides = [1, 1]} : vector<8x256xf32> to vector<8x128xf32>
    %3 = arith.addf %1, %2 : vector<8x128xf32>
    %cst = arith.constant dense<0.000000e+00> : vector<8xf32>
    %4 = vector.multi_reduction <add>, %3, %cst [1] : vector<8x128xf32> to vector<8xf32>
    %5 = vector.shape_cast %4 : vector<8xf32> to vector<8x1xf32>
    %cst_1 = arith.constant 3.906250e-03 : f32
    %6 = vector.broadcast %cst_1 : f32 to vector<8x1xf32>
    %7 = arith.mulf %5, %6 : vector<8x1xf32>
    %c0_2 = arith.constant 0 : index
    %c0_3 = arith.constant 0 : index
    %8 = vector.load %arg2[%c0_2, %c0_3] : memref<8x1xf32, #tpu.memory_space<vmem>>, vector<8x1xf32>
    tpu.vector_store %arg2[%c0_2, %c0_3], %7 {strides = array<i32>} : memref<8x1xf32, #tpu.memory_space<vmem>>, vector<8x1xf32>,
    return
  }
  func.func @transform_0(%arg0: i32) -> (i32, i32) {
    %c0_i32 = arith.constant 0 : i32
    %c0_i32_0 = arith.constant 0 : i32
    return %arg0, %c0_i32 : i32, i32
  }
  func.func @transform_1(%arg0: i32) -> (i32, i32) {
    %c0_i32 = arith.constant 0 : i32
    %c0_i32_0 = arith.constant 0 : i32
    return %arg0, %c0_i32 : i32, i32
  }
}

</mosaic_0001>

<llo_original>
// kernel: tpu_custom_call.1
$region0: #{tpu_custom_call.1}
  #allocation0 [shape = 'u32[]', space=smem, size = 0x4, offset = 0x4, fixed_abs, tag = 'smem constant byte address 0x4 - core index']
  #allocation1 [shape = 'u32[144,128]{1,0:T(1,128)}', space=vmem, size = 0x12000, scoped, tag = 'internal scratch']
  %s0 = inlined_call_operand.hbm [shape: f32[8,256], index: 0, kind: input, shape index: {}]
  %s1 = inlined_call_operand.vmem [shape: f32[8,1], index: 1, kind: output, shape index: {}]
  %s2 = sld [smem:[#allocation0]]
  $region18: #{tpu_custom_call.1} parent=0
    _
  %s4 = ssub.s32 1, %s2
  %s5 = scalar_select 0, %s4, %s2
  $region1: #{tpu_custom_call.1} parent=0
    #allocation2 [shape = 'u8[8192]{0}', space=vmem, size = 0x2000, scoped, tag = 'input window, operand 0, single buffered']
    #allocation3 [shape = 's32[1]{0}', space=sflag, size = 0x4, scoped, tag = 'scoped memory for tpu_custom_call.1']
    %6 = vsyncpa [#allocation3], 0
    // Predicated region
    $region2: #{tpu_custom_call.1} parent=1 // pred_check
      _
    $region3: #{tpu_custom_call.1} parent=1 // pred_check_branch
      %8 = sbr.rel (0) target = $region5
    $region4: #{tpu_custom_call.1} parent=1 // pred_region
      %s10 = ssub.s32 256, 256
      %11 = vsyncadd [#allocation3], %s10
      %s13 = sshll.u32 [#allocation2], 4
      %s14 = int_to_ptr.vmem [resolvable:$true] %s13
      %16 = dma.hbm_to_vmem [thread:$0]  %s0, 256, %s14, [#allocation3]
    $region5: #{tpu_custom_call.1} parent=1 // pred_fallthru
      _
    // Predicated region
    $region6: #{tpu_custom_call.1} parent=1 // pred_check
      _
    $region7: #{tpu_custom_call.1} parent=1 // pred_check_branch
      %18 = sbr.rel (0) target = $region9
    $region8: #{tpu_custom_call.1} parent=1 // pred_region
      %19 = dma.done [#allocation3], 256
    $region9: #{tpu_custom_call.1} parent=1 // pred_fallthru
      _
    %v20 = vld [vmem:[#allocation2] sm:$0xff]
    %v21 = vld [vmem:[#allocation2 + $0x8] sm:$0xff]
    %v22 = vadd.f32 %v20, %v21
    %23 = vadd.xlane.f32.xlu0 %v22
    %v24 = vpop.xlane.xlu0 %23
    %v25 = vmul.f32 %v24, 0.00390625
    %vm26 = vcmask 7168
    %27 = vst.msk [vmem:[%s1] sm:$0xff] %vm26, %v25
    // Predicated region
    $region10: #{tpu_custom_call.1} parent=1 // pred_check
      _
    $region11: #{tpu_custom_call.1} parent=1 // pred_check_branch
      %29 = sbr.rel (0) target = $region13
    $region12: #{tpu_custom_call.1} parent=1 // pred_region
      _
    $region13: #{tpu_custom_call.1} parent=1 // pred_fallthru
      _
    // Predicated region
    $region14: #{tpu_custom_call.1} parent=1 // pred_check
      _
    $region15: #{tpu_custom_call.1} parent=1 // pred_check_branch
      %31 = sbr.rel (0) target = $region17
    $region16: #{tpu_custom_call.1} parent=1 // pred_region
      _
    $region17: #{tpu_custom_call.1} parent=1 // pred_fallthru
      _
    %32 = vsyncpa [#allocation3], 1

</llo_original>
